<compile_context>
chip_gen: v6e
topology: v6e:2x2x1
jax: 0.10.0
libtpu: 0.0.40
codegen_flags: <defaults>
</compile_context>

<pallas_src>
import functools

import numpy as np
import jax
import jax.numpy as jnp
from jax.experimental import pallas as pl
from jax.experimental.pallas import tpu as pltpu


def _antecedent_kernel(centers_ref, neg_inv2var_ref, x_ref, o_ref, *, num_mf):
    # centers_ref / neg_inv2var_ref: (M,) f32 scalars in SMEM (scalar prefetch)
    # x_ref: (tb, L) VMEM input tile (native dtype)
    # o_ref: (M, tb, L) VMEM output tile (lane-dense, unmasked stores)
    x = x_ref[...].astype(jnp.float32)
    for m in range(num_mf):  # static unroll over membership functions
        d = x - centers_ref[m]
        o_ref[m] = jnp.exp((d * d) * neg_inv2var_ref[m]).astype(o_ref.dtype)


def _vmem_capacity_bytes() -> int:
    try:
        return int(pltpu.get_tpu_info().vmem_capacity_bytes)
    except Exception:
        return 64 * 1024 * 1024  # conservative (v7x-sized) fallback


def antecedent_forward(x: jax.Array, centers: jax.Array, sigmas: jax.Array,
                       *, out_dtype=jnp.float32) -> jax.Array:
    """Apply M Gaussian membership functions to x, stacked along dim 0.

    x:       arbitrary shape, any float dtype
    centers: (M,) float
    sigmas:  (M,) float
    returns: (M, *x.shape) in out_dtype (default float32)
    """
    orig_shape = x.shape
    n = int(np.prod(orig_shape)) if len(orig_shape) else 1
    M = int(centers.shape[0])

    centers = centers.astype(jnp.float32)
    # Clamp sigma away from 0 so inv-variance never becomes inf (0*inf -> NaN).
    sig = jnp.maximum(jnp.abs(sigmas.astype(jnp.float32)), 1e-12)
    neg_inv2var = -1.0 / (2.0 * sig * sig)

    # Lane dimension: fixed large multiple of 128 for unmasked lane-dense vst.
    L = 2048 if n >= 2048 else max(128, pl.cdiv(n, 128) * 128)
    rows = pl.cdiv(n, L)

    in_item = jnp.dtype(x.dtype).itemsize
    out_item = jnp.dtype(out_dtype).itemsize
    # Sublane unit: native packed tile height for the narrowest dtype in play.
    sub = max(8, 32 // min(in_item, out_item))

    # Generation-aware VMEM budget (v5e/v6e: 128 MiB physical, v7x: 64 MiB).
    vmem_cap = _vmem_capacity_bytes()
    budget = min(vmem_cap // 3, 40 * 1024 * 1024)

    # Double-buffered bytes per sublane row of a tile (input + M output slabs).
    per_row = 2 * L * in_item + 2 * M * L * out_item
    max_tb = max(sub, (budget // per_row) // sub * sub)
    tb = int(min(512, max_tb, pl.cdiv(rows, sub) * sub))
    tb = max(sub, tb)

    rows_padded = pl.cdiv(rows, tb) * tb
    total_padded = rows_padded * L

    x_flat = x.reshape(-1)
    if total_padded != n:
        x_flat = jnp.pad(x_flat, (0, total_padded - n))
    x2d = x_flat.reshape(rows_padded, L)

    grid = (rows_padded // tb,)

    # Explicit scoped-VMEM limit sized to the working set (+ headroom), so the
    # default limit (16 MiB on v5e, 32 MiB on v6e/v7x) never caps tile size.
    working_set = tb * per_row + 2 * 1024 * 1024
    vmem_limit = int(min(max(working_set, 4 * 1024 * 1024),
                         vmem_cap - 2 * 1024 * 1024))

    grid_spec = pltpu.PrefetchScalarGridSpec(
        num_scalar_prefetch=2,  # centers, neg_inv2var -> SMEM
        grid=grid,
        in_specs=[pl.BlockSpec((tb, L), lambda i, c_ref, w_ref: (i, 0))],
        out_specs=pl.BlockSpec((M, tb, L), lambda i, c_ref, w_ref: (0, i, 0)),
    )

    out2d = pl.pallas_call(
        functools.partial(_antecedent_kernel, num_mf=M),
        out_shape=jax.ShapeDtypeStruct((M, rows_padded, L), out_dtype),
        grid_spec=grid_spec,
        compiler_params=pltpu.CompilerParams(
            # Disjoint output blocks per grid step.
            # TODO(synk): on v7x, verify in xprof that both TensorCores share
            # the grid; if not, switch this axis to pltpu.CORE_PARALLEL.
            dimension_semantics=("parallel",),
            vmem_limit_bytes=vmem_limit,
        ),
    )(centers, neg_inv2var, x2d)

    out = out2d.reshape(M, total_padded)
    if total_padded != n:
        out = out[:, :n]
    return out.reshape((M,) + orig_shape)


if __name__ == "__main__":
    key = jax.random.PRNGKey(0)
    k1, k2, k3 = jax.random.split(key, 3)

    def ref_fn(x, c, s):
        xf = x.astype(jnp.float32)
        return jnp.stack(
            [jnp.exp(-((xf - c[i]) ** 2) / (2.0 * s[i] ** 2))
             for i in range(c.shape[0])],
            axis=0,
        )

    # 1) Lane-aligned shape, M=3 membership functions.
    x1 = jax.random.normal(k1, (2, 128), dtype=jnp.float32)
    c1 = jnp.array([-1.0, 0.0, 1.0], dtype=jnp.float32)
    s1 = jnp.array([0.5, 1.0, 1.5], dtype=jnp.float32)
    out1 = jax.block_until_ready(antecedent_forward(x1, c1, s1))
    assert out1.shape == (3, 2, 128)
    assert np.allclose(np.asarray(out1), np.asarray(ref_fn(x1, c1, s1)),
                       rtol=1e-5, atol=1e-5)

    # 2) Awkward non-lane-multiple 3-D shape (exercises the pad/refold path), M=4.
    x2 = jax.random.normal(k2, (3, 5, 7), dtype=jnp.float32)
    c2 = jnp.linspace(-2.0, 2.0, 4).astype(jnp.float32)
    s2 = jnp.linspace(0.5, 2.0, 4).astype(jnp.float32)
    out2 = jax.block_until_ready(antecedent_forward(x2, c2, s2))
    assert out2.shape == (4, 3, 5, 7)
    assert np.allclose(np.asarray(out2), np.asarray(ref_fn(x2, c2, s2)),
                       rtol=1e-5, atol=1e-5)

    # 3) bf16 input (cast happens inside the kernel), M=3.
    x3 = jax.random.normal(k3, (4, 96), dtype=jnp.float32).astype(jnp.bfloat16)
    out3 = jax.block_until_ready(antecedent_forward(x3, c1, s1))
    assert out3.shape == (3, 4, 96)
    assert np.allclose(np.asarray(out3), np.asarray(ref_fn(x3, c1, s1)),
                       rtol=1e-5, atol=1e-5)

    print("KERNEL_OK")
</pallas_src>

<mosaic_0001>
module attributes {stable_mosaic.version = 11 : i64} {
  func.func @_antecedent_kernel(%arg0: i32, %arg1: memref<3xf32, #tpu.memory_space<smem>>, %arg2: memref<3xf32, #tpu.memory_space<smem>>, %arg3: memref<8x256xf32, #tpu.memory_space<vmem>>, %arg4: memref<3x8x256xf32, #tpu.memory_space<vmem>>) attributes {dimension_semantics = [#tpu.dimension_semantics<parallel>], iteration_bounds = array<i64: 1>, scalar_prefetch = 2 : i64, scratch_operands = 0 : i64, tpu.core_type = #tpu.core_type<tc>, window_params = [{transform_indices = @transform_0, window_bounds = array<i64: 8, 256>}, {transform_indices = @transform_1, window_bounds = array<i64: 3, 8, 256>}]} {
    %c0 = arith.constant 0 : index
    %c0_0 = arith.constant 0 : index
    %0 = vector.load %arg3[%c0, %c0_0] : memref<8x256xf32, #tpu.memory_space<vmem>>, vector<8x256xf32>
    %c0_1 = arith.constant 0 : index
    %1 = memref.load %arg1[%c0_1] : memref<3xf32, #tpu.memory_space<smem>>
    %2 = vector.broadcast %1 : f32 to vector<8x256xf32>
    %3 = arith.subf %0, %2 : vector<8x256xf32>
    %4 = arith.mulf %3, %3 : vector<8x256xf32>
    %c0_2 = arith.constant 0 : index
    %5 = memref.load %arg2[%c0_2] : memref<3xf32, #tpu.memory_space<smem>>
    %6 = vector.broadcast %5 : f32 to vector<8x256xf32>
    %7 = arith.mulf %4, %6 : vector<8x256xf32>
    %8 = math.exp %7 : vector<8x256xf32>
    %c0_3 = arith.constant 0 : index
    %c0_4 = arith.constant 0 : index
    %c0_5 = arith.constant 0 : index
    %9 = vector.load %arg4[%c0_3, %c0_4, %c0_5] : memref<3x8x256xf32, #tpu.memory_space<vmem>>, vector<1x8x256xf32>
    %10 = vector.shape_cast %9 : vector<1x8x256xf32> to vector<8x256xf32>
    %11 = vector.shape_cast %8 : vector<8x256xf32> to vector<1x8x256xf32>
    tpu.vector_store %arg4[%c0_3, %c0_4, %c0_5], %11 {strides = array<i32>} : memref<3x8x256xf32, #tpu.memory_space<vmem>>, vector<1x8x256xf32>,
    %c1 = arith.constant 1 : index
    %12 = memref.load %arg1[%c1] : memref<3xf32, #tpu.memory_space<smem>>
    %13 = vector.broadcast %12 : f32 to vector<8x256xf32>
    %14 = arith.subf %0, %13 : vector<8x256xf32>
    %15 = arith.mulf %14, %14 : vector<8x256xf32>
    %c1_6 = arith.constant 1 : index
    %16 = memref.load %arg2[%c1_6] : memref<3xf32, #tpu.memory_space<smem>>
    %17 = vector.broadcast %16 : f32 to vector<8x256xf32>
    %18 = arith.mulf %15, %17 : vector<8x256xf32>
    %19 = math.exp %18 : vector<8x256xf32>
    %c1_7 = arith.constant 1 : index
    %c0_8 = arith.constant 0 : index
    %c0_9 = arith.constant 0 : index
    %20 = vector.load %arg4[%c1_7, %c0_8, %c0_9] : memref<3x8x256xf32, #tpu.memory_space<vmem>>, vector<1x8x256xf32>
    %21 = vector.shape_cast %20 : vector<1x8x256xf32> to vector<8x256xf32>
    %22 = vector.shape_cast %19 : vector<8x256xf32> to vector<1x8x256xf32>
    tpu.vector_store %arg4[%c1_7, %c0_8, %c0_9], %22 {strides = array<i32>} : memref<3x8x256xf32, #tpu.memory_space<vmem>>, vector<1x8x256xf32>,
    %c2 = arith.constant 2 : index
    %23 = memref.load %arg1[%c2] : memref<3xf32, #tpu.memory_space<smem>>
    %24 = vector.broadcast %23 : f32 to vector<8x256xf32>
    %25 = arith.subf %0, %24 : vector<8x256xf32>
    %26 = arith.mulf %25, %25 : vector<8x256xf32>
    %c2_10 = arith.constant 2 : index
    %27 = memref.load %arg2[%c2_10] : memref<3xf32, #tpu.memory_space<smem>>
    %28 = vector.broadcast %27 : f32 to vector<8x256xf32>
    %29 = arith.mulf %26, %28 : vector<8x256xf32>
    %30 = math.exp %29 : vector<8x256xf32>
    %c2_11 = arith.constant 2 : index
    %c0_12 = arith.constant 0 : index
    %c0_13 = arith.constant 0 : index
    %31 = vector.load %arg4[%c2_11, %c0_12, %c0_13] : memref<3x8x256xf32, #tpu.memory_space<vmem>>, vector<1x8x256xf32>
    %32 = vector.shape_cast %31 : vector<1x8x256xf32> to vector<8x256xf32>
    %33 = vector.shape_cast %30 : vector<8x256xf32> to vector<1x8x256xf32>
    tpu.vector_store %arg4[%c2_11, %c0_12, %c0_13], %33 {strides = array<i32>} : memref<3x8x256xf32, #tpu.memory_space<vmem>>, vector<1x8x256xf32>,
    return
  }
  func.func @transform_0(%arg0: i32, %arg1: memref<3xf32, #tpu.memory_space<smem>>, %arg2: memref<3xf32, #tpu.memory_space<smem>>) -> (i32, i32) {
    %c0_i32 = arith.constant 0 : i32
    %c0_i32_0 = arith.constant 0 : i32
    return %arg0, %c0_i32 : i32, i32
  }
  func.func @transform_1(%arg0: i32, %arg1: memref<3xf32, #tpu.memory_space<smem>>, %arg2: memref<3xf32, #tpu.memory_space<smem>>) -> (i32, i32, i32) {
    %c0_i32 = arith.constant 0 : i32
    %c0_i32_0 = arith.constant 0 : i32
    %c0_i32_1 = arith.constant 0 : i32
    return %c0_i32, %arg0, %c0_i32_0 : i32, i32, i32
  }
}

</mosaic_0001>

<llo_original>
// kernel: tpu_custom_call.1
$region0: #{tpu_custom_call.1}
  #allocation0 [shape = 'u32[]', space=smem, size = 0x4, offset = 0x4, fixed_abs, tag = 'smem constant byte address 0x4 - core index']
  #allocation1 [shape = 'u32[144,128]{1,0:T(1,128)}', space=vmem, size = 0x12000, scoped, tag = 'internal scratch']
  #allocation2 [shape = 's32[1]{0}', space=sflag, size = 0x4, scoped, tag = 'scoped memory for tpu_custom_call.1']
  #allocation3 [shape = 'u8[512]{0}', space=smem, size = 0x200, scoped, tag = 'prefetched SMEM operand 0']
  #allocation4 [shape = 'u8[512]{0}', space=smem, size = 0x200, scoped, tag = 'prefetched SMEM operand 1']
  %s0 = inlined_call_operand.hbm [shape: f32[3], index: 0, kind: input, shape index: {}]
  %s1 = inlined_call_operand.vmem [shape: f32[3], index: 1, kind: input, shape index: {}]
  %s2 = inlined_call_operand.hbm [shape: f32[8,256], index: 2, kind: input, shape index: {}]
  %s3 = inlined_call_operand.hbm [shape: f32[3,8,256], index: 3, kind: output, shape index: {}]
  %s4 = sld [smem:[#allocation0]]
  $region18: #{tpu_custom_call.1} parent=0
    _
  %s6 = ssub.s32 1, %s4
  %s7 = scalar_select 0, %s6, %s4
  %9 = dma.hbm_to_smem %s0, 16, [#allocation3], [#allocation2]
  %s10 = sshll.u32 %s1, 4
  %s11 = int_to_ptr.vmem [resolvable:$true] %s10
  %13 = dma.vmem_to_smem %s11, 16, [#allocation4], [#allocation2]
  %14 = dma.done [#allocation2], 32
  %15 = sfence
  $region1: #{tpu_custom_call.1} parent=0
    #allocation5 [shape = 'u8[8192]{0}', space=vmem, size = 0x2000, scoped, tag = 'input window, operand 2, single buffered']
    #allocation6 [shape = 's32[1]{0}', space=sflag, size = 0x4, scoped, tag = 'scoped memory for tpu_custom_call.1']
    #allocation7 [shape = 's32[1]{0}', space=sflag, size = 0x4, scoped, tag = 'scoped memory for tpu_custom_call.1']
    #allocation8 [shape = 'u8[24576]{0}', space=vmem, size = 0x6000, scoped, tag = 'output window, operand 0, single buffered']
    %16 = vsyncpa [#allocation6], 0
    %17 = vsyncpa [#allocation7], 0
    // Predicated region
    $region2: #{tpu_custom_call.1} parent=1 // pred_check
      _
    $region3: #{tpu_custom_call.1} parent=1 // pred_check_branch
      %19 = sbr.rel (0) target = $region5
    $region4: #{tpu_custom_call.1} parent=1 // pred_region
      %s21 = ssub.s32 256, 256
      %22 = vsyncadd [#allocation6], %s21
      %s24 = sshll.u32 [#allocation5], 4
      %s25 = int_to_ptr.vmem [resolvable:$true] %s24
      %27 = dma.hbm_to_vmem [thread:$0]  %s2, 256, %s25, [#allocation6]
    $region5: #{tpu_custom_call.1} parent=1 // pred_fallthru
      _
    // Predicated region
    $region6: #{tpu_custom_call.1} parent=1 // pred_check
      _
    $region7: #{tpu_custom_call.1} parent=1 // pred_check_branch
      %29 = sbr.rel (0) target = $region9
    $region8: #{tpu_custom_call.1} parent=1 // pred_region
      %30 = dma.done [#allocation6], 256
    $region9: #{tpu_custom_call.1} parent=1 // pred_fallthru
      _
    %v31 = vld [vmem:[#allocation5] sm:$0xff]
    %v32 = vld [vmem:[#allocation5 + $0x8] sm:$0xff]
    %s33 = sld [smem:[#allocation3]]
    %v34 = vstv %s33
    %v35 = vsub.f32 %v31, %v34
    %v36 = vsub.f32 %v32, %v34
    %v37 = vmul.f32 %v35, %v35
    %v38 = vmul.f32 %v36, %v36
    %s39 = sld [smem:[#allocation4]]
    %v40 = vstv %s39
    %v41 = vmul.f32 %v37, %v40
    %v42 = vmul.f32 %v38, %v40
    %v43 = vmul.f32 %v41, 1.442695
    %v44 = vpow.pop %v43
    %v45 = vmul.f32 %v42, 1.442695
    %v46 = vpow.pop %v45
    %47 = vst [vmem:[#allocation8] sm:$0xff] %v44
    %48 = vst [vmem:[#allocation8 + $0x8] sm:$0xff] %v46
    %s49 = sld [smem:[#allocation3 + $0x1]]
    %v50 = vstv %s49
    %v51 = vsub.f32 %v31, %v50
    %v52 = vsub.f32 %v32, %v50
    %v53 = vmul.f32 %v51, %v51
    %v54 = vmul.f32 %v52, %v52
    %s55 = sld [smem:[#allocation4 + $0x1]]
    %v56 = vstv %s55
    %v57 = vmul.f32 %v53, %v56
    %v58 = vmul.f32 %v54, %v56
    %v59 = vmul.f32 %v57, 1.442695
    %v60 = vpow.pop %v59
    %v61 = vmul.f32 %v58, 1.442695
    %v62 = vpow.pop %v61
    %s63 = scalar_lea.vmem [#allocation8], 16
    %64 = vst [vmem:[%s63] sm:$0xff] %v60
    %65 = vst [vmem:[%s63 + $0x8] sm:$0xff] %v62
    %s66 = sld [smem:[#allocation3 + $0x2]]
    %v67 = vstv %s66
    %v68 = vsub.f32 %v31, %v67
    %v69 = vsub.f32 %v32, %v67
    %v70 = vmul.f32 %v68, %v68
    %v71 = vmul.f32 %v69, %v69
    %s72 = sld [smem:[#allocation4 + $0x2]]
    %v73 = vstv %s72
    %v74 = vmul.f32 %v70, %v73
    %v75 = vmul.f32 %v71, %v73
    %v76 = vmul.f32 %v74, 1.442695
    %v77 = vpow.pop %v76
    %v78 = vmul.f32 %v75, 1.442695
    %v79 = vpow.pop %v78
    %s80 = scalar_lea.vmem [#allocation8], 32
    %81 = vst [vmem:[%s80] sm:$0xff] %v77
    %82 = vst [vmem:[%s80 + $0x8] sm:$0xff] %v79
    // Predicated region
    $region10: #{tpu_custom_call.1} parent=1 // pred_check
      _
    $region11: #{tpu_custom_call.1} parent=1 // pred_check_branch
      %84 = sbr.rel (0) target = $region13
    $region12: #{tpu_custom_call.1} parent=1 // pred_region
      %s86 = ssub.s32 768, 768
      %87 = vsyncadd [#allocation7], %s86
      %s88 = sshll.u32 [#allocation8], 4
      %s89 = int_to_ptr.vmem [resolvable:$true] %s88
      %94 = dma.vmem_to_hbm [thread:$0]  %s89, 768, %s3, [#allocation7], 256, 256, 16
    $region13: #{tpu_custom_call.1} parent=1 // pred_fallthru
      _
    // Predicated region
    $region14: #{tpu_custom_call.1} parent=1 // pred_check
      _
    $region15: #{tpu_custom_call.1} parent=1 // pred_check_branch
      %96 = sbr.rel (0) target = $region17
    $region16: #{tpu_custom_call.1} parent=1 // pred_region
      %97 = dma.done [#allocation7], 768
    $region17: #{tpu_custom_call.1} parent=1 // pred_fallthru
      _
    %98 = vsyncpa [#allocation6], 1
    %99 = vsyncpa [#allocation7], 1

</llo_original>
